<compile_context>
chip_gen: v5e
topology: v5e:2x2
jax: 0.10.0
libtpu: 0.0.40
codegen_flags: <defaults>
</compile_context>

<pallas_src>
import math

import jax
import jax.numpy as jnp
from jax.experimental import pallas as pl
from jax.experimental.pallas import tpu as pltpu


def _round_up(x: int, m: int) -> int:
    return ((x + m - 1) // m) * m


def _pick_tile(dim: int, target: int, gran: int) -> int:
    """Largest multiple of `gran` that is <= target and divides `dim`.

    `dim` must itself be a multiple of `gran` (so `gran` always divides it).
    """
    t = max(gran, (min(target, dim) // gran) * gran)
    while dim % t:
        t -= gran
    return t


def _make_kernel(scale: float):
    def weighted_linear_kernel(x_ref, w_ref, b_ref, o_ref):
        k = pl.program_id(2)

        @pl.when(k == 0)
        def _():
            o_ref[...] = jnp.zeros_like(o_ref)

        # bf16 (tm, tk) @ bf16 (tk, tn) on the MXU, accumulated in f32
        # directly into the resident output block (constant over K).
        o_ref[...] += jnp.dot(
            x_ref[...], w_ref[...], preferred_element_type=jnp.float32
        )

        # Epilogue on the last K step: fold the input scale into the
        # accumulator (matmul is linear) and add the bias row.
        @pl.when(k == pl.num_programs(2) - 1)
        def _():
            o_ref[...] = o_ref[...] * scale + b_ref[...]

    return weighted_linear_kernel


def weighted_linear(x, weight, bias, scale, *, tm=512, tn=1024, tk=1024):
    """y = (x * scale) @ weight.T + bias.

    x: (B, IN) f32; weight: (OUT, IN) f32 (torch layout); bias: (OUT,) f32;
    scale: static python float (= sqrt(2 / IN)).
    """
    B, IN = x.shape
    OUT, IN_w = weight.shape
    assert IN == IN_w and bias.shape == (OUT,)

    # Pad only to hardware granules (not tile multiples): batch -> 16 (bf16
    # sublane packing), IN/OUT -> 128 (lane-dense output, (8,128) rule).
    Bp, INp, OUTp = _round_up(B, 16), _round_up(IN, 128), _round_up(OUT, 128)

    # Tiles are divisors of the padded dims -> no second padding round.
    tm = _pick_tile(Bp, tm, 16)
    tn = _pick_tile(OUTp, tn, 128)
    tk = _pick_tile(INp, tk, 128)

    # v7x megacore: if M collapsed to one block, split N so >=2 parallel
    # blocks exist and both TensorCores get work.
    if Bp // tm == 1 and OUTp // tn < 2 and OUTp >= 256:
        tn = _pick_tile(OUTp, OUTp // 2, 128)

    grid = (Bp // tm, OUTp // tn, INp // tk)

    # bf16 operands (zero K-padding keeps the reduction exact); weight is
    # transposed once to (IN, OUT).  Pad + transpose + cast fuse into a
    # single HBM pass.
    x_p = x if (Bp, INp) == (B, IN) else jnp.pad(x, ((0, Bp - B), (0, INp - IN)))
    x_p = x_p.astype(jnp.bfloat16)
    w_p = weight if (OUTp, INp) == (OUT, IN) else jnp.pad(
        weight, ((0, OUTp - OUT), (0, INp - IN)))
    w_p = w_p.T.astype(jnp.bfloat16)                                  # (INp, OUTp)
    b_p = (bias if OUTp == OUT else jnp.pad(bias, (0, OUTp - OUT)))
    b_p = b_p.reshape(1, OUTp).astype(jnp.float32)

    cost = pl.CostEstimate(
        flops=2 * Bp * OUTp * INp,
        transcendentals=0,
        bytes_accessed=2 * (Bp * INp + INp * OUTp) + 4 * (Bp * OUTp + OUTp),
    )

    out_p = pl.pallas_call(
        _make_kernel(float(scale)),
        out_shape=jax.ShapeDtypeStruct((Bp, OUTp), jnp.float32),
        grid_spec=pltpu.PrefetchScalarGridSpec(
            num_scalar_prefetch=0,
            grid=grid,
            in_specs=[
                pl.BlockSpec((tm, tk), lambda i, j, k: (i, k)),   # x   (bf16)
                pl.BlockSpec((tk, tn), lambda i, j, k: (k, j)),   # w.T (bf16)
                pl.BlockSpec((1, tn), lambda i, j, k: (0, j)),    # bias row (f32)
            ],
            out_specs=pl.BlockSpec((tm, tn), lambda i, j, k: (i, j)),
        ),
        compiler_params=pltpu.CompilerParams(
            # M/N shard across TensorCores on v7x; K is the reduction axis
            # (output block revisited) so it stays last and "arbitrary".
            dimension_semantics=("parallel", "parallel", "arbitrary"),
            # Explicit limit: covers v5e's low 16 MiB scoped default while
            # leaving headroom under v7x's 64 MiB physical VMEM.
            vmem_limit_bytes=48 << 20,
        ),
        cost_estimate=cost,
    )(x_p, w_p, b_p)

    out = out_p[:B, :OUT]
    return out.astype(x.dtype)


if __name__ == "__main__":
    # Small shapes implied by the module: Linear(in_channels -> out_channels)
    B, IN, OUT = 8, 32, 64
    scale = math.sqrt(2.0 / IN)

    key = jax.random.PRNGKey(0)
    kx, kw = jax.random.split(key)
    x = jax.random.normal(kx, (B, IN), dtype=jnp.float32)
    # nn.init.normal_(weight): standard normal; nn.init.zeros_(bias)
    weight = jax.random.normal(kw, (OUT, IN), dtype=jnp.float32)
    bias = jnp.zeros((OUT,), dtype=jnp.float32)

    out = jax.block_until_ready(weighted_linear(x, weight, bias, scale))

    # Reference check in plain JAX (torch semantics).  Tolerance relaxed for
    # the bf16 MXU operand cast (~1e-2 relative); accumulation is still f32.
    ref = (x * scale) @ weight.T + bias
    assert out.shape == (B, OUT)
    assert jnp.allclose(out, ref, atol=2e-2, rtol=2e-2), float(
        jnp.max(jnp.abs(out - ref)))

    print("KERNEL_OK")
</pallas_src>

<mosaic_0001>
module attributes {stable_mosaic.version = 11 : i64} {
  func.func @weighted_linear_kernel(%arg0: i32, %arg1: i32, %arg2: i32, %arg3: memref<16x128xbf16, #tpu.memory_space<vmem>>, %arg4: memref<128x128xbf16, #tpu.memory_space<vmem>>, %arg5: memref<1x128xf32, #tpu.memory_space<vmem>>, %arg6: memref<16x128xf32, #tpu.memory_space<vmem>>) attributes {dimension_semantics = [#tpu.dimension_semantics<parallel>, #tpu.dimension_semantics<parallel>, #tpu.dimension_semantics<arbitrary>], iteration_bounds = array<i64: 1, 1, 1>, scalar_prefetch = 0 : i64, scratch_operands = 0 : i64, tpu.core_type = #tpu.core_type<tc>, window_params = [{transform_indices = @transform_0, window_bounds = array<i64: 16, 128>}, {transform_indices = @transform_1, window_bounds = array<i64: 128, 128>}, {transform_indices = @transform_2, window_bounds = array<i64: 1, 128>}, {transform_indices = @transform_3, window_bounds = array<i64: 16, 128>}]} {
    %c0_i32 = arith.constant 0 : i32
    %0 = arith.cmpi eq, %arg2, %c0_i32 : i32
    %1 = arith.extui %0 : i1 to i32
    %c0_i32_0 = arith.constant 0 : i32
    %2 = arith.cmpi ne, %1, %c0_i32_0 : i32
    scf.if %2 {
      %cst_10 = arith.constant 0.000000e+00 : f32
      %12 = vector.broadcast %cst_10 : f32 to vector<16x128xf32>
      %c0_11 = arith.constant 0 : index
      %c0_12 = arith.constant 0 : index
      %13 = vector.load %arg6[%c0_11, %c0_12] : memref<16x128xf32, #tpu.memory_space<vmem>>, vector<16x128xf32>
      tpu.vector_store %arg6[%c0_11, %c0_12], %12 {strides = array<i32>} : memref<16x128xf32, #tpu.memory_space<vmem>>, vector<16x128xf32>,
    } else {
    }
    %c0 = arith.constant 0 : index
    %c0_1 = arith.constant 0 : index
    %3 = vector.load %arg6[%c0, %c0_1] : memref<16x128xf32, #tpu.memory_space<vmem>>, vector<16x128xf32>
    %c0_2 = arith.constant 0 : index
    %c0_3 = arith.constant 0 : index
    %4 = vector.load %arg3[%c0_2, %c0_3] : memref<16x128xbf16, #tpu.memory_space<vmem>>, vector<16x128xbf16>
    %c0_4 = arith.constant 0 : index
    %c0_5 = arith.constant 0 : index
    %5 = vector.load %arg4[%c0_4, %c0_5] : memref<128x128xbf16, #tpu.memory_space<vmem>>, vector<128x128xbf16>
    %cst = arith.constant dense<0.000000e+00> : vector<16x128xf32>
    %6 = tpu.matmul %4, %5, %cst {dimension_numbers = #tpu.dot_dimension_numbers<[1], [0], [0], [1], [0, 0, 1, 1], [], []>} : vector<16x128xbf16>, vector<128x128xbf16>, vector<16x128xf32> -> vector<16x128xf32>
    %7 = arith.addf %3, %6 : vector<16x128xf32>
    %c0_6 = arith.constant 0 : index
    %c0_7 = arith.constant 0 : index
    %8 = vector.load %arg6[%c0_6, %c0_7] : memref<16x128xf32, #tpu.memory_space<vmem>>, vector<16x128xf32>
    tpu.vector_store %arg6[%c0_6, %c0_7], %7 {strides = array<i32>} : memref<16x128xf32, #tpu.memory_space<vmem>>, vector<16x128xf32>,
    %c0_i32_8 = arith.constant 0 : i32
    %9 = arith.cmpi eq, %arg2, %c0_i32_8 : i32
    %10 = arith.extui %9 : i1 to i32
    %c0_i32_9 = arith.constant 0 : i32
    %11 = arith.cmpi ne, %10, %c0_i32_9 : i32
    scf.if %11 {
      %c0_10 = arith.constant 0 : index
      %c0_11 = arith.constant 0 : index
      %12 = vector.load %arg6[%c0_10, %c0_11] : memref<16x128xf32, #tpu.memory_space<vmem>>, vector<16x128xf32>
      %cst_12 = arith.constant 2.500000e-01 : f32
      %13 = vector.broadcast %cst_12 : f32 to vector<16x128xf32>
      %14 = arith.mulf %12, %13 : vector<16x128xf32>
      %c0_13 = arith.constant 0 : index
      %c0_14 = arith.constant 0 : index
      %15 = vector.load %arg5[%c0_13, %c0_14] : memref<1x128xf32, #tpu.memory_space<vmem>>, vector<1x128xf32>
      %16 = vector.broadcast %15 : vector<1x128xf32> to vector<16x128xf32>
      %17 = arith.addf %14, %16 : vector<16x128xf32>
      %c0_15 = arith.constant 0 : index
      %c0_16 = arith.constant 0 : index
      %18 = vector.load %arg6[%c0_15, %c0_16] : memref<16x128xf32, #tpu.memory_space<vmem>>, vector<16x128xf32>
      tpu.vector_store %arg6[%c0_15, %c0_16], %17 {strides = array<i32>} : memref<16x128xf32, #tpu.memory_space<vmem>>, vector<16x128xf32>,
    } else {
    }
    return
  }
  func.func @transform_0(%arg0: i32, %arg1: i32, %arg2: i32) -> (i32, i32) {
    %c0_i32 = arith.constant 0 : i32
    return %arg0, %arg2 : i32, i32
  }
  func.func @transform_1(%arg0: i32, %arg1: i32, %arg2: i32) -> (i32, i32) {
    %c0_i32 = arith.constant 0 : i32
    return %arg2, %arg1 : i32, i32
  }
  func.func @transform_2(%arg0: i32, %arg1: i32, %arg2: i32) -> (i32, i32) {
    %c0_i32 = arith.constant 0 : i32
    %c0_i32_0 = arith.constant 0 : i32
    return %c0_i32, %arg1 : i32, i32
  }
  func.func @transform_3(%arg0: i32, %arg1: i32, %arg2: i32) -> (i32, i32) {
    %c0_i32 = arith.constant 0 : i32
    return %arg0, %arg1 : i32, i32
  }
}

</mosaic_0001>

<llo_original>
// kernel: tpu_custom_call.1
$region0: #{tpu_custom_call.1}
  #allocation0 [shape = 'u32[]', space=smem, size = 0x4, offset = 0x4, fixed_abs, tag = 'smem constant byte address 0x4 - core index']
  #allocation1 [shape = 'u32[72,128]{1,0:T(1,128)}', space=vmem, size = 0x9000, scoped, tag = 'internal scratch']
  %s0 = inlined_call_operand.hbm [shape: bf16[16,128], index: 0, kind: input, shape index: {}]
  %s1 = inlined_call_operand.hbm [shape: bf16[128,128], index: 1, kind: input, shape index: {}]
  %s2 = inlined_call_operand.vmem [shape: f32[1,128], index: 2, kind: input, shape index: {}]
  %s3 = inlined_call_operand.hbm [shape: f32[16,128], index: 3, kind: output, shape index: {}]
  %s4 = sld [smem:[#allocation0]]
  $region38: #{tpu_custom_call.1} parent=0
    _
  %s6 = ssub.s32 1, %s4
  %s7 = scalar_select 0, %s6, %s4
  $region1: #{tpu_custom_call.1} parent=0
    #allocation2 [shape = 'u8[4096]{0}', space=vmem, size = 0x1000, scoped, tag = 'input window, operand 0, single buffered']
    #allocation3 [shape = 's32[1]{0}', space=sflag, size = 0x4, scoped, tag = 'scoped memory for tpu_custom_call.1']
    #allocation4 [shape = 's32[1]{0}', space=sflag, size = 0x4, scoped, tag = 'scoped memory for tpu_custom_call.1']
    #allocation5 [shape = 'u8[32768]{0}', space=vmem, size = 0x8000, scoped, tag = 'input window, operand 1, single buffered']
    #allocation6 [shape = 's32[1]{0}', space=sflag, size = 0x4, scoped, tag = 'scoped memory for tpu_custom_call.1']
    #allocation7 [shape = 'u8[8192]{0}', space=vmem, size = 0x2000, scoped, tag = 'output window, operand 0, single buffered']
    %8 = vsyncpa [#allocation3], 0
    %9 = vsyncpa [#allocation6], 0
    %10 = vsyncpa [#allocation4], 0
    // Predicated region
    $region2: #{tpu_custom_call.1} parent=1 // pred_check
      _
    $region3: #{tpu_custom_call.1} parent=1 // pred_check_branch
      %12 = sbr.rel (0) target = $region5
    $region4: #{tpu_custom_call.1} parent=1 // pred_region
      %14 = vsyncadd [#allocation3], 0
      %s15 = sshll.u32 %s0, 4
      %s16 = int_to_ptr.hbm [resolvable:$true] %s15
      %s17 = sshll.u32 [#allocation2], 4
      %s18 = int_to_ptr.vmem [resolvable:$true] %s17
      %23 = dma.hbm_to_vmem [thread:$0]  %s16, 128, %s18, [#allocation3], 64, 64, 4
    $region5: #{tpu_custom_call.1} parent=1 // pred_fallthru
      _
    // Predicated region
    $region6: #{tpu_custom_call.1} parent=1 // pred_check
      _
    $region7: #{tpu_custom_call.1} parent=1 // pred_check_branch
      %25 = sbr.rel (0) target = $region9
    $region8: #{tpu_custom_call.1} parent=1 // pred_region
      %27 = vsyncadd [#allocation6], 0
      %s28 = sshll.u32 %s1, 4
      %s29 = int_to_ptr.hbm [resolvable:$true] %s28
      %s30 = sshll.u32 [#allocation5], 4
      %s31 = int_to_ptr.vmem [resolvable:$true] %s30
      %36 = dma.hbm_to_vmem [thread:$0]  %s29, 1024, %s31, [#allocation6], 64, 64, 4
    $region9: #{tpu_custom_call.1} parent=1 // pred_fallthru
      _
    // Predicated region
    $region10: #{tpu_custom_call.1} parent=1 // pred_check
      _
    $region11: #{tpu_custom_call.1} parent=1 // pred_check_branch
      %38 = sbr.rel (0) target = $region13
    $region12: #{tpu_custom_call.1} parent=1 // pred_region
      _
    $region13: #{tpu_custom_call.1} parent=1 // pred_fallthru
      _
    // Predicated region
    $region14: #{tpu_custom_call.1} parent=1 // pred_check
      _
    $region15: #{tpu_custom_call.1} parent=1 // pred_check_branch
      %40 = sbr.rel (0) target = $region17
    $region16: #{tpu_custom_call.1} parent=1 // pred_region
      %42 = dma.done [#allocation3], 128
    $region17: #{tpu_custom_call.1} parent=1 // pred_fallthru
      _
    // Predicated region
    $region18: #{tpu_custom_call.1} parent=1 // pred_check
      _
    $region19: #{tpu_custom_call.1} parent=1 // pred_check_branch
      %44 = sbr.rel (0) target = $region21
    $region20: #{tpu_custom_call.1} parent=1 // pred_region
      %46 = dma.done [#allocation6], 1024
    $region21: #{tpu_custom_call.1} parent=1 // pred_fallthru
      _
    %p47 = scmp.eq.s32.totalorder 0, 0
    // Predicated region
    $region22: #{tpu_custom_call.1} parent=1 // pred_check
      %p48 = pneg %p47
    $region23: #{tpu_custom_call.1} parent=1 // pred_check_branch
      %50 = sbr.rel (%p48) target = $region25
    $region24: #{tpu_custom_call.1} parent=1 // pred_region
      %51 = vst [vmem:[#allocation7] sm:$0xff] 0.0
      %52 = vst [vmem:[#allocation7 + $0x8] sm:$0xff] 0.0
    $region25: #{tpu_custom_call.1} parent=1 // pred_fallthru
      _
    %v53 = vld [vmem:[#allocation7] sm:$0xff]
    %v54 = vld [vmem:[#allocation7 + $0x8] sm:$0xff]
    %v55 = vld [vmem:[#allocation2] sm:$0xf]
    %v56 = vld [vmem:[#allocation2 + $0x4] sm:$0xf]
    %v57 = vld [vmem:[#allocation5] sm:$0xf]
    %v58 = vld [vmem:[#allocation5 + $0x4] sm:$0xf]
    %v59 = vld [vmem:[#allocation5 + $0x8] sm:$0xf]
    %v60 = vld [vmem:[#allocation5 + $0xc] sm:$0xf]
    %v61 = vld [vmem:[#allocation5 + $0x10] sm:$0xf]
    %v62 = vld [vmem:[#allocation5 + $0x14] sm:$0xf]
    %v63 = vld [vmem:[#allocation5 + $0x18] sm:$0xf]
    %v64 = vld [vmem:[#allocation5 + $0x1c] sm:$0xf]
    %v65 = vld [vmem:[#allocation5 + $0x20] sm:$0xf]
    %v66 = vld [vmem:[#allocation5 + $0x24] sm:$0xf]
    %v67 = vld [vmem:[#allocation5 + $0x28] sm:$0xf]
    %v68 = vld [vmem:[#allocation5 + $0x2c] sm:$0xf]
    %v69 = vld [vmem:[#allocation5 + $0x30] sm:$0xf]
    %v70 = vld [vmem:[#allocation5 + $0x34] sm:$0xf]
    %v71 = vld [vmem:[#allocation5 + $0x38] sm:$0xf]
    %v72 = vld [vmem:[#allocation5 + $0x3c] sm:$0xf]
    %v75 = vunpack.c.l.b16 %v55
    %v76 = vunpack.c.l.b16 %v56
    %v77 = vpack.c.b16 %v76, %v75
    %v95 = vunpack.c.l.b16 %v57
    %v96 = vunpack.c.l.b16 %v58
    %v97 = vunpack.c.l.b16 %v59
    %v98 = vunpack.c.l.b16 %v60
    %v99 = vunpack.c.l.b16 %v61
    %v100 = vunpack.c.l.b16 %v62
    %v101 = vunpack.c.l.b16 %v63
    %v102 = vunpack.c.l.b16 %v64
    %v103 = vunpack.c.l.b16 %v65
    %v104 = vunpack.c.l.b16 %v66
    %v105 = vunpack.c.l.b16 %v67
    %v106 = vunpack.c.l.b16 %v68
    %v107 = vunpack.c.l.b16 %v69
    %v108 = vunpack.c.l.b16 %v70
    %v109 = vunpack.c.l.b16 %v71
    %v110 = vunpack.c.l.b16 %v72
    %v111 = vpack.c.b16 %v96, %v95
    %v112 = vpack.c.b16 %v98, %v97
    %v113 = vpack.c.b16 %v100, %v99
    %v114 = vpack.c.b16 %v102, %v101
    %v115 = vpack.c.b16 %v104, %v103
    %v116 = vpack.c.b16 %v106, %v105
    %v117 = vpack.c.b16 %v108, %v107
    %v118 = vpack.c.b16 %v110, %v109
    %127 = vmatpush.bf16.msra.mxu0 %v118
    %128 = vmatpush.bf16.msra.mxu0 %v117
    %129 = vmatpush.bf16.msra.mxu0 %v116
    %130 = vmatpush.bf16.msra.mxu0 %v115
    %131 = vmatpush.bf16.msra.mxu0 %v114
    %132 = vmatpush.bf16.msra.mxu0 %v113
    %133 = vmatpush.bf16.msra.mxu0 %v112
    %134 = vmatpush.bf16.msra.mxu0 %v111
    %135 = vmatmul.bf16.gmra.mxu0 %v77
    %v136 = vpop.f32.mrf.mxu0
    %v137 = vadd.f32 0.0, %v136
    %v138 = vpop.f32.mrf.mxu0
    %v139 = vadd.f32 0.0, %v138
    %140 = vdwg.mxu0
    %v141 = vadd.f32 %v53, %v137
    %v142 = vadd.f32 %v54, %v139
    %143 = vst [vmem:[#allocation7] sm:$0xff] %v141
    %144 = vst [vmem:[#allocation7 + $0x8] sm:$0xff] %v142
    // Predicated region
    $region26: #{tpu_custom_call.1} parent=1 // pred_check
      %p145 = pneg %p47
    $region27: #{tpu_custom_call.1} parent=1 // pred_check_branch
      %147 = sbr.rel (%p145) target = $region29
    $region28: #{tpu_custom_call.1} parent=1 // pred_region
      %v148 = vld [vmem:[#allocation7] sm:$0xff]
      %v149 = vld [vmem:[#allocation7 + $0x8] sm:$0xff]
      %v150 = vmul.f32 %v148, 0.25
      %v151 = vmul.f32 %v149, 0.25
      %v152 = vld [vmem:[%s2] sm:$0x1]
      %v154 = vperm.slane %v152, 0
      %v156 = vadd.f32 %v150, %v154
      %v157 = vadd.f32 %v151, %v154
      %158 = vst [vmem:[#allocation7] sm:$0xff] %v156
      %159 = vst [vmem:[#allocation7 + $0x8] sm:$0xff] %v157
    $region29: #{tpu_custom_call.1} parent=1 // pred_fallthru
      _
    // Predicated region
    $region30: #{tpu_custom_call.1} parent=1 // pred_check
      _
    $region31: #{tpu_custom_call.1} parent=1 // pred_check_branch
      %161 = sbr.rel (0) target = $region33
    $region32: #{tpu_custom_call.1} parent=1 // pred_region
      %163 = vsyncadd [#allocation4], 0
      %s164 = sshll.u32 [#allocation7], 4
      %s165 = int_to_ptr.vmem [resolvable:$true] %s164
      %s166 = sshll.u32 %s3, 4
      %s167 = int_to_ptr.hbm [resolvable:$true] %s166
      %172 = dma.vmem_to_hbm [thread:$0]  %s165, 256, %s167, [#allocation4], 128, 128, 8
    $region33: #{tpu_custom_call.1} parent=1 // pred_fallthru
      _
    // Predicated region
    $region34: #{tpu_custom_call.1} parent=1 // pred_check
      _
    $region35: #{tpu_custom_call.1} parent=1 // pred_check_branch
      %174 = sbr.rel (0) target = $region37
    $region36: #{tpu_custom_call.1} parent=1 // pred_region
      %176 = dma.done [#allocation4], 256
    $region37: #{tpu_custom_call.1} parent=1 // pred_fallthru
      _
    %177 = vsyncpa [#allocation3], 1
    %178 = vsyncpa [#allocation6], 1
    %179 = vsyncpa [#allocation4], 1

</llo_original>
